<compile_context>
chip_gen: v5e
topology: v5e:2x2
jax: 0.10.0
libtpu: 0.0.40
codegen_flags: <defaults>
</compile_context>

<pallas_src>
import functools

import jax
import jax.numpy as jnp
from jax.experimental import pallas as pl
from jax.experimental.pallas import tpu as pltpu

OUT_LANES = 128   # lane-dense output slab width (unmasked vst)
TILE_MAX = 4096   # max batch rows per grid step (comfortably inside VMEM)


def _round_up(x, m):
    return ((x + m - 1) // m) * m


def _choose_tile(batch):
    """Pick a batch tile that (a) caps VMEM use, (b) minimizes padding, and
    (c) yields >= 2 grid steps when possible so v7x's 2nd TensorCore is used."""
    batch8 = _round_up(batch, 8)
    n_steps = pl.cdiv(batch8, TILE_MAX)
    if batch8 >= 16:
        n_steps = max(n_steps, 2)
    tile_b = _round_up(pl.cdiv(batch8, n_steps), 8)
    batch_p = _round_up(batch8, tile_b)
    return tile_b, batch_p


def _eltwise_dtype():
    """bf16 for the final tanh/scale on chips with bf16 VPU/EUP (v6e, v7x);
    f32 otherwise (v5e and older have no bf16 elementwise units)."""
    try:
        kind = jax.devices()[0].device_kind.lower()
    except Exception:
        return jnp.float32
    if ("v6" in kind) or ("v7" in kind) or ("7x" in kind):
        return jnp.bfloat16
    return jnp.float32


def actor_kernel(x_ref, w1_ref, w2_ref, w3_ref, w4_ref, b_ref, o_ref,
                 *, action_lim, h1, h2, h3, eltwise_dtype):
    """One batch tile of the fused MLP. bf16 MXU dots, f32 accumulation."""
    b = b_ref[...]  # (8, 128) f32: row l holds layer-(l+1) bias, zero padded

    # cast f32 state to bf16 in-kernel (VPU work, free vs. HBM traffic)
    x = x_ref[...].astype(jnp.bfloat16)

    # layer 1: Linear + ReLU
    h = jnp.dot(x, w1_ref[...], preferred_element_type=jnp.float32)
    h = jnp.maximum(h + b[0:1, :h1], 0.0)

    # layer 2: Linear + ReLU
    h = jnp.dot(h.astype(w2_ref.dtype), w2_ref[...],
                preferred_element_type=jnp.float32)
    h = jnp.maximum(h + b[1:2, :h2], 0.0)

    # layer 3: Linear + ReLU
    h = jnp.dot(h.astype(w3_ref.dtype), w3_ref[...],
                preferred_element_type=jnp.float32)
    h = jnp.maximum(h + b[2:3, :h3], 0.0)

    # output layer (padded to 128 lanes): Linear -> tanh -> scale -> bf16 store
    y = jnp.dot(h.astype(w4_ref.dtype), w4_ref[...],
                preferred_element_type=jnp.float32)
    y = (y + b[3:4, :]).astype(eltwise_dtype)
    act = jnp.tanh(y) * jnp.asarray(action_lim, eltwise_dtype)
    o_ref[...] = act.astype(o_ref.dtype)


def actor_forward(state, params, *, action_lim=1.0):
    """params: list of (W, b) with W shaped (in_dim, out_dim), b shaped (1, out_dim)."""
    (w1, b1), (w2, b2), (w3, b3), (w4, b4) = params
    batch, state_dim = state.shape
    h1, h2, h3 = w1.shape[1], w2.shape[1], w3.shape[1]
    action_size = w4.shape[1]
    assert max(h1, h2, h3, action_size) <= OUT_LANES, (
        "all layer widths must fit a single 128-lane slab")

    # --- batch tiling (balanced, minimal padding, >=2 steps when possible) ---
    tile_b, batch_p = _choose_tile(batch)
    if batch_p != batch:
        state = jnp.pad(state, ((0, batch_p - batch), (0, 0)))

    # --- pad the output layer to a lane-dense 128-wide slab ---
    w4p = jnp.pad(w4, ((0, 0), (0, OUT_LANES - action_size)))

    # --- pack the four biases into a single (8, 128) f32 buffer ---
    bias_pack = jnp.zeros((8, OUT_LANES), jnp.float32)
    bias_pack = bias_pack.at[0, :h1].set(b1.reshape(-1))
    bias_pack = bias_pack.at[1, :h2].set(b2.reshape(-1))
    bias_pack = bias_pack.at[2, :h3].set(b3.reshape(-1))
    bias_pack = bias_pack.at[3, :action_size].set(b4.reshape(-1))

    # --- bf16 weights; f32 state is cast inside the kernel ---
    w1b, w2b, w3b, w4b = (w.astype(jnp.bfloat16) for w in (w1, w2, w3, w4p))

    kernel = functools.partial(actor_kernel, action_lim=float(action_lim),
                               h1=h1, h2=h2, h3=h3,
                               eltwise_dtype=_eltwise_dtype())

    resident = lambda i: (0, 0)  # weights/biases stay in VMEM across the grid
    grid = (batch_p // tile_b,)

    flops = 2 * batch_p * (state_dim * h1 + h1 * h2 + h2 * h3 + h3 * OUT_LANES)
    bytes_accessed = (batch_p * state_dim * 4            # f32 state read
                      + batch_p * OUT_LANES * 2          # bf16 output write
                      + sum(int(w.size) * 2 for w in (w1b, w2b, w3b, w4b))
                      + bias_pack.size * 4)

    out = pl.pallas_call(
        kernel,
        out_shape=jax.ShapeDtypeStruct((batch_p, OUT_LANES), jnp.bfloat16),
        grid=grid,
        in_specs=[
            pl.BlockSpec((tile_b, state_dim), lambda i: (i, 0)),   # pipelined
            pl.BlockSpec((state_dim, h1), resident),
            pl.BlockSpec((h1, h2), resident),
            pl.BlockSpec((h2, h3), resident),
            pl.BlockSpec((h3, OUT_LANES), resident),
            pl.BlockSpec((8, OUT_LANES), resident),
        ],
        out_specs=pl.BlockSpec((tile_b, OUT_LANES), lambda i: (i, 0)),
        compiler_params=pltpu.CompilerParams(
            dimension_semantics=("parallel",),
            vmem_limit_bytes=32 * 1024 * 1024),
        cost_estimate=pl.CostEstimate(
            flops=flops,
            transcendentals=batch_p * OUT_LANES,
            bytes_accessed=bytes_accessed),
    )(state, w1b, w2b, w3b, w4b, bias_pack)

    # bf16 slab; slice out the real rows/columns (half the re-read bytes of
    # the previous f32 slab).
    return out[:batch, :action_size]


def init_params(key, state_dim, action_size):
    """Synthetic init mirroring the PyTorch intent: xavier_uniform_ weights +
    0.01 bias on hidden layers; normal_ weights + 0.01 bias on the output."""
    hidden_layers = [64, 32, 8]
    dims = [state_dim] + hidden_layers
    params = []
    keys = jax.random.split(key, len(dims))
    for i, (in_d, out_d) in enumerate(zip(dims[:-1], dims[1:])):
        limit = (6.0 / (in_d + out_d)) ** 0.5
        w = jax.random.uniform(keys[i], (in_d, out_d), jnp.float32,
                               minval=-limit, maxval=limit)
        b = jnp.full((1, out_d), 0.01, jnp.float32)
        params.append((w, b))
    w_out = jax.random.normal(keys[-1], (dims[-1], action_size), jnp.float32)
    b_out = jnp.full((1, action_size), 0.01, jnp.float32)
    params.append((w_out, b_out))
    return params


def actor_forward_ref(state, params, *, action_lim=1.0):
    """Pure-JAX reference with the same matmul precision policy (bf16 dots,
    f32 accumulation); elementwise kept in f32."""
    h = state.astype(jnp.bfloat16)
    for w, b in params[:-1]:
        h = jnp.dot(h, w.astype(jnp.bfloat16),
                    preferred_element_type=jnp.float32) + b
        h = jnp.maximum(h, 0.0).astype(jnp.bfloat16)
    w, b = params[-1]
    y = jnp.dot(h, w.astype(jnp.bfloat16),
                preferred_element_type=jnp.float32) + b
    return jnp.tanh(y) * action_lim


if __name__ == "__main__":
    batch = 8
    state_dim = 16
    action_size = 2
    action_limit = 1.0

    key = jax.random.PRNGKey(0)
    k_state, k_params = jax.random.split(key)

    state = jax.random.normal(k_state, (batch, state_dim), jnp.float32)
    params = init_params(k_params, state_dim, action_size)

    # bf16 output store (+ optional bf16 tanh on v6e/v7x) -> compare loosely.
    TOL = dict(atol=2e-2, rtol=2e-2)

    out = actor_forward(state, params, action_lim=action_limit)
    out = jax.block_until_ready(out)
    ref = actor_forward_ref(state, params, action_lim=action_limit)
    assert out.shape == (batch, action_size)
    assert jnp.allclose(out.astype(jnp.float32), ref, **TOL), "mismatch vs reference"

    # ragged batch (not a multiple of 8): exercises the padding path
    state5 = state[:5]
    out5 = jax.block_until_ready(
        actor_forward(state5, params, action_lim=action_limit))
    ref5 = actor_forward_ref(state5, params, action_lim=action_limit)
    assert out5.shape == (5, action_size)
    assert jnp.allclose(out5.astype(jnp.float32), ref5, **TOL), "mismatch (ragged batch)"

    # multi-tile grid path (>= 2 grid steps, balanced tiles)
    state24 = jnp.tile(state, (3, 1))
    out24 = jax.block_until_ready(
        actor_forward(state24, params, action_lim=action_limit))
    ref24 = actor_forward_ref(state24, params, action_lim=action_limit)
    assert out24.shape == (24, action_size)
    assert jnp.allclose(out24.astype(jnp.float32), ref24, **TOL), "mismatch (multi-tile)"

    print("KERNEL_OK")
</pallas_src>

<mosaic_0001>
module attributes {stable_mosaic.version = 11 : i64} {
  func.func @actor_kernel(%arg0: i32, %arg1: memref<8x16xf32, #tpu.memory_space<vmem>>, %arg2: memref<16x64xbf16, #tpu.memory_space<vmem>>, %arg3: memref<64x32xbf16, #tpu.memory_space<vmem>>, %arg4: memref<32x8xbf16, #tpu.memory_space<vmem>>, %arg5: memref<8x128xbf16, #tpu.memory_space<vmem>>, %arg6: memref<8x128xf32, #tpu.memory_space<vmem>>, %arg7: memref<8x128xbf16, #tpu.memory_space<vmem>>) attributes {dimension_semantics = [#tpu.dimension_semantics<parallel>], iteration_bounds = array<i64: 1>, scalar_prefetch = 0 : i64, scratch_operands = 0 : i64, tpu.core_type = #tpu.core_type<tc>, window_params = [{transform_indices = @transform_0, window_bounds = array<i64: 8, 16>}, {pipeline_mode = #tpu.pipeline_mode<synchronous>, transform_indices = @transform_1, window_bounds = array<i64: 16, 64>}, {pipeline_mode = #tpu.pipeline_mode<synchronous>, transform_indices = @transform_2, window_bounds = array<i64: 64, 32>}, {pipeline_mode = #tpu.pipeline_mode<synchronous>, transform_indices = @transform_3, window_bounds = array<i64: 32, 8>}, {pipeline_mode = #tpu.pipeline_mode<synchronous>, transform_indices = @transform_4, window_bounds = array<i64: 8, 128>}, {pipeline_mode = #tpu.pipeline_mode<synchronous>, transform_indices = @transform_5, window_bounds = array<i64: 8, 128>}, {transform_indices = @transform_6, window_bounds = array<i64: 8, 128>}]} {
    %c0 = arith.constant 0 : index
    %c0_0 = arith.constant 0 : index
    %0 = vector.load %arg6[%c0, %c0_0] : memref<8x128xf32, #tpu.memory_space<vmem>>, vector<8x128xf32>
    %c0_1 = arith.constant 0 : index
    %c0_2 = arith.constant 0 : index
    %1 = vector.load %arg1[%c0_1, %c0_2] : memref<8x16xf32, #tpu.memory_space<vmem>>, vector<8x16xf32>
    %2 = arith.truncf %1 : vector<8x16xf32> to vector<8x16xbf16>
    %c0_3 = arith.constant 0 : index
    %c0_4 = arith.constant 0 : index
    %3 = vector.load %arg2[%c0_3, %c0_4] : memref<16x64xbf16, #tpu.memory_space<vmem>>, vector<16x64xbf16>
    %cst = arith.constant dense<0.000000e+00> : vector<8x64xf32>
    %4 = tpu.matmul %2, %3, %cst {dimension_numbers = #tpu.dot_dimension_numbers<[1], [0], [0], [1], [0, 0, 1, 1], [], []>} : vector<8x16xbf16>, vector<16x64xbf16>, vector<8x64xf32> -> vector<8x64xf32>
    %5 = vector.extract_strided_slice %0 {offsets = [0, 0], sizes = [1, 64], strides = [1, 1]} : vector<8x128xf32> to vector<1x64xf32>
    %6 = vector.broadcast %5 : vector<1x64xf32> to vector<8x64xf32>
    %7 = arith.addf %4, %6 : vector<8x64xf32>
    %cst_5 = arith.constant 0.000000e+00 : f32
    %8 = vector.broadcast %cst_5 : f32 to vector<8x64xf32>
    %9 = arith.maximumf %7, %8 : vector<8x64xf32>
    %10 = arith.truncf %9 : vector<8x64xf32> to vector<8x64xbf16>
    %c0_6 = arith.constant 0 : index
    %c0_7 = arith.constant 0 : index
    %11 = vector.load %arg3[%c0_6, %c0_7] : memref<64x32xbf16, #tpu.memory_space<vmem>>, vector<64x32xbf16>
    %cst_8 = arith.constant dense<0.000000e+00> : vector<8x32xf32>
    %12 = tpu.matmul %10, %11, %cst_8 {dimension_numbers = #tpu.dot_dimension_numbers<[1], [0], [0], [1], [0, 0, 1, 1], [], []>} : vector<8x64xbf16>, vector<64x32xbf16>, vector<8x32xf32> -> vector<8x32xf32>
    %13 = vector.extract_strided_slice %0 {offsets = [1, 0], sizes = [1, 32], strides = [1, 1]} : vector<8x128xf32> to vector<1x32xf32>
    %14 = vector.broadcast %13 : vector<1x32xf32> to vector<8x32xf32>
    %15 = arith.addf %12, %14 : vector<8x32xf32>
    %cst_9 = arith.constant 0.000000e+00 : f32
    %16 = vector.broadcast %cst_9 : f32 to vector<8x32xf32>
    %17 = arith.maximumf %15, %16 : vector<8x32xf32>
    %18 = arith.truncf %17 : vector<8x32xf32> to vector<8x32xbf16>
    %c0_10 = arith.constant 0 : index
    %c0_11 = arith.constant 0 : index
    %19 = vector.load %arg4[%c0_10, %c0_11] : memref<32x8xbf16, #tpu.memory_space<vmem>>, vector<32x8xbf16>
    %cst_12 = arith.constant dense<0.000000e+00> : vector<8x8xf32>
    %20 = tpu.matmul %18, %19, %cst_12 {dimension_numbers = #tpu.dot_dimension_numbers<[1], [0], [0], [1], [0, 0, 1, 1], [], []>} : vector<8x32xbf16>, vector<32x8xbf16>, vector<8x8xf32> -> vector<8x8xf32>
    %21 = vector.extract_strided_slice %0 {offsets = [2, 0], sizes = [1, 8], strides = [1, 1]} : vector<8x128xf32> to vector<1x8xf32>
    %22 = vector.broadcast %21 : vector<1x8xf32> to vector<8x8xf32>
    %23 = arith.addf %20, %22 : vector<8x8xf32>
    %cst_13 = arith.constant 0.000000e+00 : f32
    %24 = vector.broadcast %cst_13 : f32 to vector<8x8xf32>
    %25 = arith.maximumf %23, %24 : vector<8x8xf32>
    %26 = arith.truncf %25 : vector<8x8xf32> to vector<8x8xbf16>
    %c0_14 = arith.constant 0 : index
    %c0_15 = arith.constant 0 : index
    %27 = vector.load %arg5[%c0_14, %c0_15] : memref<8x128xbf16, #tpu.memory_space<vmem>>, vector<8x128xbf16>
    %cst_16 = arith.constant dense<0.000000e+00> : vector<8x128xf32>
    %28 = tpu.matmul %26, %27, %cst_16 {dimension_numbers = #tpu.dot_dimension_numbers<[1], [0], [0], [1], [0, 0, 1, 1], [], []>} : vector<8x8xbf16>, vector<8x128xbf16>, vector<8x128xf32> -> vector<8x128xf32>
    %29 = vector.extract_strided_slice %0 {offsets = [3, 0], sizes = [1, 128], strides = [1, 1]} : vector<8x128xf32> to vector<1x128xf32>
    %30 = vector.broadcast %29 : vector<1x128xf32> to vector<8x128xf32>
    %31 = arith.addf %28, %30 : vector<8x128xf32>
    %32 = math.tanh %31 : vector<8x128xf32>
    %cst_17 = arith.constant 1.000000e+00 : f32
    %33 = vector.broadcast %cst_17 : f32 to vector<8x128xf32>
    %34 = arith.mulf %32, %33 : vector<8x128xf32>
    %35 = arith.truncf %34 : vector<8x128xf32> to vector<8x128xbf16>
    %c0_18 = arith.constant 0 : index
    %c0_19 = arith.constant 0 : index
    %36 = vector.load %arg7[%c0_18, %c0_19] : memref<8x128xbf16, #tpu.memory_space<vmem>>, vector<8x128xbf16>
    tpu.vector_store %arg7[%c0_18, %c0_19], %35 {strides = array<i32>} : memref<8x128xbf16, #tpu.memory_space<vmem>>, vector<8x128xbf16>,
    return
  }
  func.func @transform_0(%arg0: i32) -> (i32, i32) {
    %c0_i32 = arith.constant 0 : i32
    %c0_i32_0 = arith.constant 0 : i32
    return %arg0, %c0_i32 : i32, i32
  }
  func.func @transform_1(%arg0: i32) -> (i32, i32) {
    %c0_i32 = arith.constant 0 : i32
    %c0_i32_0 = arith.constant 0 : i32
    %c0_i32_1 = arith.constant 0 : i32
    return %c0_i32, %c0_i32_0 : i32, i32
  }
  func.func @transform_2(%arg0: i32) -> (i32, i32) {
    %c0_i32 = arith.constant 0 : i32
    %c0_i32_0 = arith.constant 0 : i32
    %c0_i32_1 = arith.constant 0 : i32
    return %c0_i32, %c0_i32_0 : i32, i32
  }
  func.func @transform_3(%arg0: i32) -> (i32, i32) {
    %c0_i32 = arith.constant 0 : i32
    %c0_i32_0 = arith.constant 0 : i32
    %c0_i32_1 = arith.constant 0 : i32
    return %c0_i32, %c0_i32_0 : i32, i32
  }
  func.func @transform_4(%arg0: i32) -> (i32, i32) {
    %c0_i32 = arith.constant 0 : i32
    %c0_i32_0 = arith.constant 0 : i32
    %c0_i32_1 = arith.constant 0 : i32
    return %c0_i32, %c0_i32_0 : i32, i32
  }
  func.func @transform_5(%arg0: i32) -> (i32, i32) {
    %c0_i32 = arith.constant 0 : i32
    %c0_i32_0 = arith.constant 0 : i32
    %c0_i32_1 = arith.constant 0 : i32
    return %c0_i32, %c0_i32_0 : i32, i32
  }
  func.func @transform_6(%arg0: i32) -> (i32, i32) {
    %c0_i32 = arith.constant 0 : i32
    %c0_i32_0 = arith.constant 0 : i32
    return %arg0, %c0_i32 : i32, i32
  }
}

</mosaic_0001>

<llo_original>
// kernel: tpu_custom_call.1
$region0: #{tpu_custom_call.1}
  #allocation0 [shape = 'u32[]', space=smem, size = 0x4, offset = 0x4, fixed_abs, tag = 'smem constant byte address 0x4 - core index']
  #allocation1 [shape = 'u32[72,128]{1,0:T(1,128)}', space=vmem, size = 0x9000, scoped, tag = 'internal scratch']
  %s0 = inlined_call_operand.vmem [shape: f32[8,16], index: 0, kind: input, shape index: {}]
  %s1 = inlined_call_operand.vmem [shape: bf16[16,64], index: 1, kind: input, shape index: {}]
  %s2 = inlined_call_operand.vmem [shape: bf16[64,32], index: 2, kind: input, shape index: {}]
  %s3 = inlined_call_operand.vmem [shape: bf16[32,8], index: 3, kind: input, shape index: {}]
  %s4 = inlined_call_operand.vmem [shape: bf16[8,128], index: 4, kind: input, shape index: {}]
  %s5 = inlined_call_operand.vmem [shape: f32[8,128], index: 5, kind: input, shape index: {}]
  %s6 = inlined_call_operand.hbm [shape: bf16[8,128], index: 6, kind: output, shape index: {}]
  %s7 = sld [smem:[#allocation0]]
  $region34: #{tpu_custom_call.1} parent=0
    _
  %s9 = ssub.s32 1, %s7
  %s10 = scalar_select 0, %s9, %s7
  $region1: #{tpu_custom_call.1} parent=0
    #allocation2 [shape = 'u8[2048]{0}', space=vmem, size = 0x800, scoped, tag = 'output window, operand 0, single buffered']
    #allocation3 [shape = 's32[1]{0}', space=sflag, size = 0x4, scoped, tag = 'scoped memory for tpu_custom_call.1']
    %11 = vsyncpa [#allocation3], 0
    // Predicated region
    $region2: #{tpu_custom_call.1} parent=1 // pred_check
      _
    $region3: #{tpu_custom_call.1} parent=1 // pred_check_branch
      %13 = sbr.rel (0) target = $region5
    $region4: #{tpu_custom_call.1} parent=1 // pred_region
      _
    $region5: #{tpu_custom_call.1} parent=1 // pred_fallthru
      _
    // Predicated region
    $region6: #{tpu_custom_call.1} parent=1 // pred_check
      _
    $region7: #{tpu_custom_call.1} parent=1 // pred_check_branch
      %15 = sbr.rel (0) target = $region9
    $region8: #{tpu_custom_call.1} parent=1 // pred_region
      _
    $region9: #{tpu_custom_call.1} parent=1 // pred_fallthru
      _
    // Predicated region
    $region10: #{tpu_custom_call.1} parent=1 // pred_check
      _
    $region11: #{tpu_custom_call.1} parent=1 // pred_check_branch
      %17 = sbr.rel (0) target = $region13
    $region12: #{tpu_custom_call.1} parent=1 // pred_region
      _
    $region13: #{tpu_custom_call.1} parent=1 // pred_fallthru
      _
    // Predicated region
    $region14: #{tpu_custom_call.1} parent=1 // pred_check
      _
    $region15: #{tpu_custom_call.1} parent=1 // pred_check_branch
      %19 = sbr.rel (0) target = $region17
    $region16: #{tpu_custom_call.1} parent=1 // pred_region
      _
    $region17: #{tpu_custom_call.1} parent=1 // pred_fallthru
      _
    // Predicated region
    $region18: #{tpu_custom_call.1} parent=1 // pred_check
      _
    $region19: #{tpu_custom_call.1} parent=1 // pred_check_branch
      %21 = sbr.rel (0) target = $region21
    $region20: #{tpu_custom_call.1} parent=1 // pred_region
      _
    $region21: #{tpu_custom_call.1} parent=1 // pred_fallthru
      _
    // Predicated region
    $region22: #{tpu_custom_call.1} parent=1 // pred_check
      _
    $region23: #{tpu_custom_call.1} parent=1 // pred_check_branch
      %23 = sbr.rel (0) target = $region25
    $region24: #{tpu_custom_call.1} parent=1 // pred_region
      _
    $region25: #{tpu_custom_call.1} parent=1 // pred_fallthru
      _
    %v25 = vld [vmem:[%s5] sm:$0xff]
    %v26 = vld [vmem:[%s0] sm:$0xff]
    %v27 = vpack.c.bf16 %v26, %v26
    %v28 = vld [vmem:[%s1] sm:$0xf]
    %v29 = vld [vmem:[%s1 + $0x4] sm:$0xf]
    %v30 = vperm.slane %v25, 0
    %v33 = vunpack.c.l.b16 %v28
    %v34 = vunpack.c.l.b16 %v29
    %v35 = vpack.c.b16 %v34, %v33
    %vm37 = vcmask 130048
    %v39 = vsel %vm37, %v27, 0
    %41 = vmatpush.bf16.msra.mxu0 0
    %42 = vmatpush.bf16.msra.mxu0 0
    %43 = vmatpush.bf16.msra.mxu0 0
    %44 = vmatpush.bf16.msra.mxu0 0
    %45 = vmatpush.bf16.msra.mxu0 0
    %46 = vmatpush.bf16.msra.mxu0 0
    %47 = vmatpush.bf16.msra.mxu0 0
    %48 = vmatpush.bf16.msra.mxu0 %v35
    %49 = vmatmul.bf16.gmra.mxu0 %v39
    %v50 = vpop.f32.mrf.mxu0
    %v51 = vadd.f32 %v30, %v50
    %v52 = vpop.f32.mrf.mxu0
    %53 = vdwg.mxu0
    %v54 = vmax.f32 %v51, 0.0
    %v55 = vpack.c.bf16 %v54, %v54
    %v56 = vld [vmem:[%s2] sm:$0xf]
    %v57 = vld [vmem:[%s2 + $0x4] sm:$0xf]
    %v58 = vld [vmem:[%s2 + $0x8] sm:$0xf]
    %v59 = vld [vmem:[%s2 + $0xc] sm:$0xf]
    %v60 = vld [vmem:[%s2 + $0x10] sm:$0xf]
    %v61 = vld [vmem:[%s2 + $0x14] sm:$0xf]
    %v62 = vld [vmem:[%s2 + $0x18] sm:$0xf]
    %v63 = vld [vmem:[%s2 + $0x1c] sm:$0xf]
    %v64 = vperm.slane %v25, 1
    %v73 = vunpack.c.l.b16 %v56
    %v74 = vunpack.c.l.b16 %v57
    %v75 = vunpack.c.l.b16 %v58
    %v76 = vunpack.c.l.b16 %v59
    %v77 = vunpack.c.l.b16 %v60
    %v78 = vunpack.c.l.b16 %v61
    %v79 = vunpack.c.l.b16 %v62
    %v80 = vunpack.c.l.b16 %v63
    %v81 = vpack.c.b16 %v74, %v73
    %v82 = vpack.c.b16 %v76, %v75
    %v83 = vpack.c.b16 %v78, %v77
    %v84 = vpack.c.b16 %v80, %v79
    %vm89 = vcmask 523264
    %v91 = vsel %vm89, %v55, 0
    %93 = vmatpush.bf16.msra.mxu0 0
    %94 = vmatpush.bf16.msra.mxu0 0
    %95 = vmatpush.bf16.msra.mxu0 0
    %96 = vmatpush.bf16.msra.mxu0 0
    %97 = vmatpush.bf16.msra.mxu0 %v84
    %98 = vmatpush.bf16.msra.mxu0 %v83
    %99 = vmatpush.bf16.msra.mxu0 %v82
    %100 = vmatpush.bf16.msra.mxu0 %v81
    %101 = vmatmul.bf16.gmra.mxu0 %v91
    %v102 = vpop.f32.mrf.mxu0
    %v103 = vadd.f32 %v64, %v102
    %v104 = vpop.f32.mrf.mxu0
    %105 = vdwg.mxu0
    %v106 = vmax.f32 %v103, 0.0
    %v107 = vpack.c.bf16 %v106, %v106
    %v108 = vld [vmem:[%s3] sm:$0xf]
    %v109 = vld [vmem:[%s3 + $0x4] sm:$0xf]
    %v110 = vld [vmem:[%s3 + $0x8] sm:$0xf]
    %v111 = vld [vmem:[%s3 + $0xc] sm:$0xf]
    %v112 = vperm.slane %v25, 2
    %v117 = vunpack.c.l.b16 %v108
    %v118 = vunpack.c.l.b16 %v109
    %v119 = vunpack.c.l.b16 %v110
    %v120 = vunpack.c.l.b16 %v111
    %v121 = vpack.c.b16 %v118, %v117
    %v122 = vpack.c.b16 %v120, %v119
    %vm125 = vcmask 261120
    %v127 = vsel %vm125, %v107, 0
    %129 = vmatpush.bf16.msra.mxu0 0
    %130 = vmatpush.bf16.msra.mxu0 0
    %131 = vmatpush.bf16.msra.mxu0 0
    %132 = vmatpush.bf16.msra.mxu0 0
    %133 = vmatpush.bf16.msra.mxu0 0
    %134 = vmatpush.bf16.msra.mxu0 0
    %135 = vmatpush.bf16.msra.mxu0 %v122
    %136 = vmatpush.bf16.msra.mxu0 %v121
    %137 = vmatmul.bf16.gmra.mxu0 %v127
    %v138 = vpop.f32.mrf.mxu0
    %v139 = vadd.f32 %v112, %v138
    %v140 = vpop.f32.mrf.mxu0
    %141 = vdwg.mxu0
    %v142 = vmax.f32 %v139, 0.0
    %v143 = vpack.c.bf16 %v142, %v142
    %v144 = vld [vmem:[%s4] sm:$0xf]
    %v145 = vperm.slane %v25, 3
    %vm146 = vcmask 64512
    %v148 = vsel %vm146, %v143, 0
    %vm150 = vcmask 1043456
    %v152 = vsel %vm150, %v144, 0
    %154 = vmatpush.bf16.msra.mxu0 0
    %155 = vmatpush.bf16.msra.mxu0 0
    %156 = vmatpush.bf16.msra.mxu0 0
    %157 = vmatpush.bf16.msra.mxu0 0
    %158 = vmatpush.bf16.msra.mxu0 0
    %159 = vmatpush.bf16.msra.mxu0 0
    %160 = vmatpush.bf16.msra.mxu0 0
    %161 = vmatpush.bf16.msra.mxu0 %v152
    %162 = vmatmul.bf16.gmra.mxu0 %v148
    %v163 = vpop.f32.mrf.mxu0
    %v164 = vadd.f32 %v145, %v163
    %v165 = vpop.f32.mrf.mxu0
    %166 = vdwg.mxu0
    %v167 = vtanh.pop %v164
    %v168 = vpack.c.bf16 %v167, %v167
    %169 = vst [vmem:[#allocation2] sm:$0xf] %v168
    // Predicated region
    $region26: #{tpu_custom_call.1} parent=1 // pred_check
      _
    $region27: #{tpu_custom_call.1} parent=1 // pred_check_branch
      %171 = sbr.rel (0) target = $region29
    $region28: #{tpu_custom_call.1} parent=1 // pred_region
      %173 = vsyncadd [#allocation3], 0
      %s175 = sshll.u32 [#allocation2], 4
      %s176 = int_to_ptr.vmem [resolvable:$true] %s175
      %s177 = sshll.u32 %s6, 4
      %s178 = int_to_ptr.hbm [resolvable:$true] %s177
      %180 = dma.vmem_to_hbm [thread:$0]  %s176, 64, %s178, [#allocation3]
    $region29: #{tpu_custom_call.1} parent=1 // pred_fallthru
      _
    // Predicated region
    $region30: #{tpu_custom_call.1} parent=1 // pred_check
      _
    $region31: #{tpu_custom_call.1} parent=1 // pred_check_branch
      %182 = sbr.rel (0) target = $region33
    $region32: #{tpu_custom_call.1} parent=1 // pred_region
      %184 = dma.done [#allocation3], 64
    $region33: #{tpu_custom_call.1} parent=1 // pred_fallthru
      _
    %185 = vsyncpa [#allocation3], 1

</llo_original>
